<compile_context>
chip_gen: v6e
topology: v6e:2x2x1
jax: 0.10.0
libtpu: 0.0.40
codegen_flags: <defaults>
</compile_context>

<pallas_src>
import jax
import jax.numpy as jnp
from jax.experimental import pallas as pl
from jax.experimental.pallas import tpu as pltpu


def vae_forward_kernel(
    x_ref, eps_ref,
    w1_ref, b1_ref, w23_ref, b23_ref, w4_ref, b4_ref, w5_ref, b5_ref,
    recon_ref, meanvar_ref,
):
    """Fused VAE forward for one batch tile: encoder -> reparameterize -> decoder."""
    latent = eps_ref.shape[-1]

    x = x_ref[...]

    # ---- encoder ----
    h = jnp.dot(x, w1_ref[...], preferred_element_type=jnp.float32) + b1_ref[...]
    h = jnp.maximum(h, 0.0)  # relu

    # fused mean/var head: one MXU dot, lane-dense [TB, 2*latent] result.
    mv = jnp.dot(h, w23_ref[...], preferred_element_type=jnp.float32) + b23_ref[...]
    mean = mv[:, :latent]
    var = mv[:, latent:]

    # ---- reparameterize trick: z = mean + exp(var) * epsilon ----
    z = mean + jnp.exp(var) * eps_ref[...]

    # ---- decoder ----
    h2 = jnp.dot(z, w4_ref[...], preferred_element_type=jnp.float32) + b4_ref[...]
    h2 = jnp.maximum(h2, 0.0)  # relu
    logits = jnp.dot(h2, w5_ref[...], preferred_element_type=jnp.float32) + b5_ref[...]
    # sigmoid via tanh: keeps the transcendental on the (otherwise idle) EUP.
    recon = 0.5 * (jnp.tanh(0.5 * logits) + 1.0)

    recon_ref[...] = recon.astype(recon_ref.dtype)
    meanvar_ref[...] = mv.astype(meanvar_ref.dtype)


def init_linear(key, in_dim, out_dim, dtype=jnp.float32):
    """PyTorch-style nn.Linear init: U(-1/sqrt(in), 1/sqrt(in)), torch [out,in] layout."""
    kw, kb = jax.random.split(key)
    bound = 1.0 / jnp.sqrt(jnp.asarray(in_dim, dtype))
    w = jax.random.uniform(kw, (out_dim, in_dim), dtype, -bound, bound)
    b = jax.random.uniform(kb, (out_dim,), dtype, -bound, bound)
    return w, b


def prepare_params(params):
    """One-time param prep (NOT in the hot path):
    transpose to [in, out], fuse the mean/var head, reshape biases to [1, out]."""
    w1 = params["w1"].T                                              # [in,   feat]
    b1 = params["b1"].reshape(1, -1)
    w23 = jnp.concatenate([params["w2"].T, params["w3"].T], axis=1)  # [feat, 2*latent]
    b23 = jnp.concatenate([params["b2"], params["b3"]]).reshape(1, -1)
    w4 = params["w4"].T                                              # [lat,  feat]
    b4 = params["b4"].reshape(1, -1)
    w5 = params["w5"].T                                              # [feat, out]
    b5 = params["b5"].reshape(1, -1)
    return (w1, b1, w23, b23, w4, b4, w5, b5)


@jax.jit
def vae_forward(x, eps, prepped):
    """Batched fused forward. Handles arbitrary B by padding to a tile multiple."""
    w1, b1, w23, b23, w4, b4, w5, b5 = prepped
    B, in_dim = x.shape
    feat = w1.shape[1]
    two_latent = w23.shape[1]
    latent = two_latent // 2
    out_dim = w5.shape[1]

    # Batch tile: multiple of 8 (sublane granularity), capped at 256 rows/step.
    tb = min(256, ((B + 7) // 8) * 8)
    b_pad = pl.cdiv(B, tb) * tb
    if b_pad != B:
        x = jnp.pad(x, ((0, b_pad - B), (0, 0)))
        eps = jnp.pad(eps, ((0, b_pad - B), (0, 0)))

    batched = lambda n: pl.BlockSpec((tb, n), lambda i: (i, 0))
    bcast = lambda a: pl.BlockSpec(a.shape, lambda i: (0, 0))

    cost = pl.CostEstimate(
        flops=2 * b_pad * (in_dim * feat + feat * two_latent + latent * feat + feat * out_dim),
        transcendentals=b_pad * (latent + out_dim),
        bytes_accessed=4 * (x.size + eps.size
                            + w1.size + b1.size + w23.size + b23.size
                            + w4.size + b4.size + w5.size + b5.size
                            + b_pad * (out_dim + two_latent)),
    )

    recon, meanvar = pl.pallas_call(
        vae_forward_kernel,
        out_shape=(
            jax.ShapeDtypeStruct((b_pad, out_dim), x.dtype),
            jax.ShapeDtypeStruct((b_pad, two_latent), x.dtype),  # [mean || var], lane-dense
        ),
        grid=(b_pad // tb,),
        in_specs=[
            batched(in_dim),    # x
            batched(latent),    # eps
            bcast(w1), bcast(b1),
            bcast(w23), bcast(b23),
            bcast(w4), bcast(b4),
            bcast(w5), bcast(b5),
        ],
        out_specs=(batched(out_dim), batched(two_latent)),
        compiler_params=pltpu.CompilerParams(dimension_semantics=("parallel",)),
        cost_estimate=cost,
    )(x, eps, w1, b1, w23, b23, w4, b4, w5, b5)

    recon = recon[:B]
    mean = meanvar[:B, :latent]
    var = meanvar[:B, latent:]
    return recon, mean, var


def reference_forward(x, eps, params):
    """Pure-JAX reference mirroring the PyTorch forward (torch-layout weights)."""
    h = jax.nn.relu(x @ params["w1"].T + params["b1"])
    mean = h @ params["w2"].T + params["b2"]
    var = h @ params["w3"].T + params["b3"]
    z = mean + jnp.exp(var) * eps
    h2 = jax.nn.relu(z @ params["w4"].T + params["b4"])
    recon = jax.nn.sigmoid(h2 @ params["w5"].T + params["b5"])
    return recon, mean, var


if __name__ == "__main__":
    # VAE_Model(input=32, feature=64, latent=16, output=32), small batch.
    # batch=10 also exercises the pad-to-sublane-multiple + slice-back path.
    batch, input_dim, feature_dim, latent_dim, output_dim = 10, 32, 64, 16, 32

    key = jax.random.PRNGKey(0)
    keys = jax.random.split(key, 8)

    params = {}
    params["w1"], params["b1"] = init_linear(keys[0], input_dim, feature_dim)
    params["w2"], params["b2"] = init_linear(keys[1], feature_dim, latent_dim)
    params["w3"], params["b3"] = init_linear(keys[2], feature_dim, latent_dim)
    params["w4"], params["b4"] = init_linear(keys[3], latent_dim, feature_dim)
    params["w5"], params["b5"] = init_linear(keys[4], feature_dim, output_dim)

    x = jax.random.normal(keys[5], (batch, input_dim), jnp.float32)
    # epsilon of the reparameterization trick (torch.randn_like), generated
    # deterministically outside and passed into the kernel.
    # TODO(synk): could instead draw eps in-kernel via pltpu.prng_seed + stateful_normal.
    eps = jax.random.normal(keys[6], (batch, latent_dim), jnp.float32)

    prepped = prepare_params(params)  # one-time: transposes / fusion out of hot path

    recon, mean, var = vae_forward(x, eps, prepped)
    jax.block_until_ready((recon, mean, var))

    # Sanity check against the pure-JAX reference.
    ref_recon, ref_mean, ref_var = reference_forward(x, eps, params)
    assert jnp.allclose(recon, ref_recon, atol=1e-5, rtol=1e-5)
    assert jnp.allclose(mean, ref_mean, atol=1e-5, rtol=1e-5)
    assert jnp.allclose(var, ref_var, atol=1e-5, rtol=1e-5)

    print("KERNEL_OK")
</pallas_src>

<mosaic_0001>
module attributes {stable_mosaic.version = 11 : i64} {
  func.func @vae_forward_kernel(%arg0: i32, %arg1: memref<16x32xf32, #tpu.memory_space<vmem>>, %arg2: memref<16x16xf32, #tpu.memory_space<vmem>>, %arg3: memref<32x64xf32, #tpu.memory_space<vmem>>, %arg4: memref<1x64xf32, #tpu.memory_space<vmem>>, %arg5: memref<64x32xf32, #tpu.memory_space<vmem>>, %arg6: memref<1x32xf32, #tpu.memory_space<vmem>>, %arg7: memref<16x64xf32, #tpu.memory_space<vmem>>, %arg8: memref<1x64xf32, #tpu.memory_space<vmem>>, %arg9: memref<64x32xf32, #tpu.memory_space<vmem>>, %arg10: memref<1x32xf32, #tpu.memory_space<vmem>>, %arg11: memref<16x32xf32, #tpu.memory_space<vmem>>, %arg12: memref<16x32xf32, #tpu.memory_space<vmem>>) attributes {dimension_semantics = [#tpu.dimension_semantics<parallel>], iteration_bounds = array<i64: 1>, scalar_prefetch = 0 : i64, scratch_operands = 0 : i64, tpu.core_type = #tpu.core_type<tc>, window_params = [{transform_indices = @transform_0, window_bounds = array<i64: 16, 32>}, {transform_indices = @transform_1, window_bounds = array<i64: 16, 16>}, {pipeline_mode = #tpu.pipeline_mode<synchronous>, transform_indices = @transform_2, window_bounds = array<i64: 32, 64>}, {pipeline_mode = #tpu.pipeline_mode<synchronous>, transform_indices = @transform_3, window_bounds = array<i64: 1, 64>}, {pipeline_mode = #tpu.pipeline_mode<synchronous>, transform_indices = @transform_4, window_bounds = array<i64: 64, 32>}, {pipeline_mode = #tpu.pipeline_mode<synchronous>, transform_indices = @transform_5, window_bounds = array<i64: 1, 32>}, {pipeline_mode = #tpu.pipeline_mode<synchronous>, transform_indices = @transform_6, window_bounds = array<i64: 16, 64>}, {pipeline_mode = #tpu.pipeline_mode<synchronous>, transform_indices = @transform_7, window_bounds = array<i64: 1, 64>}, {pipeline_mode = #tpu.pipeline_mode<synchronous>, transform_indices = @transform_8, window_bounds = array<i64: 64, 32>}, {pipeline_mode = #tpu.pipeline_mode<synchronous>, transform_indices = @transform_9, window_bounds = array<i64: 1, 32>}, {transform_indices = @transform_10, window_bounds = array<i64: 16, 32>}, {transform_indices = @transform_11, window_bounds = array<i64: 16, 32>}]} {
    %c0 = arith.constant 0 : index
    %c0_0 = arith.constant 0 : index
    %0 = vector.load %arg1[%c0, %c0_0] : memref<16x32xf32, #tpu.memory_space<vmem>>, vector<16x32xf32>
    %c0_1 = arith.constant 0 : index
    %c0_2 = arith.constant 0 : index
    %1 = vector.load %arg3[%c0_1, %c0_2] : memref<32x64xf32, #tpu.memory_space<vmem>>, vector<32x64xf32>
    %cst = arith.constant dense<0.000000e+00> : vector<16x64xf32>
    %2 = tpu.matmul %0, %1, %cst {dimension_numbers = #tpu.dot_dimension_numbers<[1], [0], [0], [1], [0, 0, 1, 1], [], []>} : vector<16x32xf32>, vector<32x64xf32>, vector<16x64xf32> -> vector<16x64xf32>
    %c0_3 = arith.constant 0 : index
    %c0_4 = arith.constant 0 : index
    %3 = vector.load %arg4[%c0_3, %c0_4] : memref<1x64xf32, #tpu.memory_space<vmem>>, vector<1x64xf32>
    %4 = vector.broadcast %3 : vector<1x64xf32> to vector<16x64xf32>
    %5 = arith.addf %2, %4 : vector<16x64xf32>
    %cst_5 = arith.constant 0.000000e+00 : f32
    %6 = vector.broadcast %cst_5 : f32 to vector<16x64xf32>
    %7 = arith.maximumf %5, %6 : vector<16x64xf32>
    %c0_6 = arith.constant 0 : index
    %c0_7 = arith.constant 0 : index
    %8 = vector.load %arg5[%c0_6, %c0_7] : memref<64x32xf32, #tpu.memory_space<vmem>>, vector<64x32xf32>
    %cst_8 = arith.constant dense<0.000000e+00> : vector<16x32xf32>
    %9 = tpu.matmul %7, %8, %cst_8 {dimension_numbers = #tpu.dot_dimension_numbers<[1], [0], [0], [1], [0, 0, 1, 1], [], []>} : vector<16x64xf32>, vector<64x32xf32>, vector<16x32xf32> -> vector<16x32xf32>
    %c0_9 = arith.constant 0 : index
    %c0_10 = arith.constant 0 : index
    %10 = vector.load %arg6[%c0_9, %c0_10] : memref<1x32xf32, #tpu.memory_space<vmem>>, vector<1x32xf32>
    %11 = vector.broadcast %10 : vector<1x32xf32> to vector<16x32xf32>
    %12 = arith.addf %9, %11 : vector<16x32xf32>
    %13 = vector.extract_strided_slice %12 {offsets = [0, 0], sizes = [16, 16], strides = [1, 1]} : vector<16x32xf32> to vector<16x16xf32>
    %14 = vector.extract_strided_slice %12 {offsets = [0, 16], sizes = [16, 16], strides = [1, 1]} : vector<16x32xf32> to vector<16x16xf32>
    %15 = math.exp %14 : vector<16x16xf32>
    %c0_11 = arith.constant 0 : index
    %c0_12 = arith.constant 0 : index
    %16 = vector.load %arg2[%c0_11, %c0_12] : memref<16x16xf32, #tpu.memory_space<vmem>>, vector<16x16xf32>
    %17 = arith.mulf %15, %16 : vector<16x16xf32>
    %18 = arith.addf %13, %17 : vector<16x16xf32>
    %c0_13 = arith.constant 0 : index
    %c0_14 = arith.constant 0 : index
    %19 = vector.load %arg7[%c0_13, %c0_14] : memref<16x64xf32, #tpu.memory_space<vmem>>, vector<16x64xf32>
    %cst_15 = arith.constant dense<0.000000e+00> : vector<16x64xf32>
    %20 = tpu.matmul %18, %19, %cst_15 {dimension_numbers = #tpu.dot_dimension_numbers<[1], [0], [0], [1], [0, 0, 1, 1], [], []>} : vector<16x16xf32>, vector<16x64xf32>, vector<16x64xf32> -> vector<16x64xf32>
    %c0_16 = arith.constant 0 : index
    %c0_17 = arith.constant 0 : index
    %21 = vector.load %arg8[%c0_16, %c0_17] : memref<1x64xf32, #tpu.memory_space<vmem>>, vector<1x64xf32>
    %22 = vector.broadcast %21 : vector<1x64xf32> to vector<16x64xf32>
    %23 = arith.addf %20, %22 : vector<16x64xf32>
    %cst_18 = arith.constant 0.000000e+00 : f32
    %24 = vector.broadcast %cst_18 : f32 to vector<16x64xf32>
    %25 = arith.maximumf %23, %24 : vector<16x64xf32>
    %c0_19 = arith.constant 0 : index
    %c0_20 = arith.constant 0 : index
    %26 = vector.load %arg9[%c0_19, %c0_20] : memref<64x32xf32, #tpu.memory_space<vmem>>, vector<64x32xf32>
    %cst_21 = arith.constant dense<0.000000e+00> : vector<16x32xf32>
    %27 = tpu.matmul %25, %26, %cst_21 {dimension_numbers = #tpu.dot_dimension_numbers<[1], [0], [0], [1], [0, 0, 1, 1], [], []>} : vector<16x64xf32>, vector<64x32xf32>, vector<16x32xf32> -> vector<16x32xf32>
    %c0_22 = arith.constant 0 : index
    %c0_23 = arith.constant 0 : index
    %28 = vector.load %arg10[%c0_22, %c0_23] : memref<1x32xf32, #tpu.memory_space<vmem>>, vector<1x32xf32>
    %29 = vector.broadcast %28 : vector<1x32xf32> to vector<16x32xf32>
    %30 = arith.addf %27, %29 : vector<16x32xf32>
    %cst_24 = arith.constant 5.000000e-01 : f32
    %31 = vector.broadcast %cst_24 : f32 to vector<16x32xf32>
    %32 = arith.mulf %31, %30 : vector<16x32xf32>
    %33 = math.tanh %32 : vector<16x32xf32>
    %cst_25 = arith.constant 1.000000e+00 : f32
    %34 = vector.broadcast %cst_25 : f32 to vector<16x32xf32>
    %35 = arith.addf %33, %34 : vector<16x32xf32>
    %cst_26 = arith.constant 5.000000e-01 : f32
    %36 = vector.broadcast %cst_26 : f32 to vector<16x32xf32>
    %37 = arith.mulf %36, %35 : vector<16x32xf32>
    %c0_27 = arith.constant 0 : index
    %c0_28 = arith.constant 0 : index
    %38 = vector.load %arg11[%c0_27, %c0_28] : memref<16x32xf32, #tpu.memory_space<vmem>>, vector<16x32xf32>
    tpu.vector_store %arg11[%c0_27, %c0_28], %37 {strides = array<i32>} : memref<16x32xf32, #tpu.memory_space<vmem>>, vector<16x32xf32>,
    %c0_29 = arith.constant 0 : index
    %c0_30 = arith.constant 0 : index
    %39 = vector.load %arg12[%c0_29, %c0_30] : memref<16x32xf32, #tpu.memory_space<vmem>>, vector<16x32xf32>
    tpu.vector_store %arg12[%c0_29, %c0_30], %12 {strides = array<i32>} : memref<16x32xf32, #tpu.memory_space<vmem>>, vector<16x32xf32>,
    return
  }
  func.func @transform_0(%arg0: i32) -> (i32, i32) {
    %c0_i32 = arith.constant 0 : i32
    %c0_i32_0 = arith.constant 0 : i32
    return %arg0, %c0_i32 : i32, i32
  }
  func.func @transform_1(%arg0: i32) -> (i32, i32) {
    %c0_i32 = arith.constant 0 : i32
    %c0_i32_0 = arith.constant 0 : i32
    return %arg0, %c0_i32 : i32, i32
  }
  func.func @transform_2(%arg0: i32) -> (i32, i32) {
    %c0_i32 = arith.constant 0 : i32
    %c0_i32_0 = arith.constant 0 : i32
    %c0_i32_1 = arith.constant 0 : i32
    return %c0_i32, %c0_i32_0 : i32, i32
  }
  func.func @transform_3(%arg0: i32) -> (i32, i32) {
    %c0_i32 = arith.constant 0 : i32
    %c0_i32_0 = arith.constant 0 : i32
    %c0_i32_1 = arith.constant 0 : i32
    return %c0_i32, %c0_i32_0 : i32, i32
  }
  func.func @transform_4(%arg0: i32) -> (i32, i32) {
    %c0_i32 = arith.constant 0 : i32
    %c0_i32_0 = arith.constant 0 : i32
    %c0_i32_1 = arith.constant 0 : i32
    return %c0_i32, %c0_i32_0 : i32, i32
  }
  func.func @transform_5(%arg0: i32) -> (i32, i32) {
    %c0_i32 = arith.constant 0 : i32
    %c0_i32_0 = arith.constant 0 : i32
    %c0_i32_1 = arith.constant 0 : i32
    return %c0_i32, %c0_i32_0 : i32, i32
  }
  func.func @transform_6(%arg0: i32) -> (i32, i32) {
    %c0_i32 = arith.constant 0 : i32
    %c0_i32_0 = arith.constant 0 : i32
    %c0_i32_1 = arith.constant 0 : i32
    return %c0_i32, %c0_i32_0 : i32, i32
  }
  func.func @transform_7(%arg0: i32) -> (i32, i32) {
    %c0_i32 = arith.constant 0 : i32
    %c0_i32_0 = arith.constant 0 : i32
    %c0_i32_1 = arith.constant 0 : i32
    return %c0_i32, %c0_i32_0 : i32, i32
  }
  func.func @transform_8(%arg0: i32) -> (i32, i32) {
    %c0_i32 = arith.constant 0 : i32
    %c0_i32_0 = arith.constant 0 : i32
    %c0_i32_1 = arith.constant 0 : i32
    return %c0_i32, %c0_i32_0 : i32, i32
  }
  func.func @transform_9(%arg0: i32) -> (i32, i32) {
    %c0_i32 = arith.constant 0 : i32
    %c0_i32_0 = arith.constant 0 : i32
    %c0_i32_1 = arith.constant 0 : i32
    return %c0_i32, %c0_i32_0 : i32, i32
  }
  func.func @transform_10(%arg0: i32) -> (i32, i32) {
    %c0_i32 = arith.constant 0 : i32
    %c0_i32_0 = arith.constant 0 : i32
    return %arg0, %c0_i32 : i32, i32
  }
  func.func @transform_11(%arg0: i32) -> (i32, i32) {
    %c0_i32 = arith.constant 0 : i32
    %c0_i32_0 = arith.constant 0 : i32
    return %arg0, %c0_i32 : i32, i32
  }
}

</mosaic_0001>

<llo_original>
// kernel: vae_forward.1
$region0: #{vae_forward.1}
  #allocation0 [shape = 'u32[]', space=smem, size = 0x4, offset = 0x4, fixed_abs, tag = 'smem constant byte address 0x4 - core index']
  #allocation1 [shape = 'u32[144,128]{1,0:T(1,128)}', space=vmem, size = 0x12000, scoped, tag = 'internal scratch']
  %s0 = inlined_call_operand.vmem [shape: f32[16,32], index: 0, kind: input, shape index: {}]
  %s1 = inlined_call_operand.vmem [shape: f32[16,16], index: 1, kind: input, shape index: {}]
  %s2 = inlined_call_operand.vmem [shape: f32[32,64], index: 2, kind: input, shape index: {}]
  %s3 = inlined_call_operand.vmem [shape: f32[1,64], index: 3, kind: input, shape index: {}]
  %s4 = inlined_call_operand.vmem [shape: f32[64,32], index: 4, kind: input, shape index: {}]
  %s5 = inlined_call_operand.vmem [shape: f32[1,32], index: 5, kind: input, shape index: {}]
  %s6 = inlined_call_operand.vmem [shape: f32[16,64], index: 6, kind: input, shape index: {}]
  %s7 = inlined_call_operand.vmem [shape: f32[1,64], index: 7, kind: input, shape index: {}]
  %s8 = inlined_call_operand.vmem [shape: f32[64,32], index: 8, kind: input, shape index: {}]
  %s9 = inlined_call_operand.vmem [shape: f32[1,32], index: 9, kind: input, shape index: {}]
  %s10 = inlined_call_operand.hbm [shape: f32[16,32], index: 10, kind: output, shape index: {0}]
  %s11 = inlined_call_operand.vmem [shape: f32[16,32], index: 11, kind: output, shape index: {1}]
  %12 = xla_tuple %s10, %s11
  %s13 = sld [smem:[#allocation0]]
  $region58: #{vae_forward.1} parent=0
    _
  %s15 = ssub.s32 1, %s13
  %s16 = scalar_select 0, %s15, %s13
  $region1: #{vae_forward.1} parent=0
    #allocation2 [shape = 'u8[8192]{0}', space=vmem, size = 0x2000, scoped, tag = 'output window, operand 0, single buffered']
    #allocation3 [shape = 's32[1]{0}', space=sflag, size = 0x4, scoped, tag = 'scoped memory for vae_forward.1']
    %17 = vsyncpa [#allocation3], 0
    // Predicated region
    $region2: #{vae_forward.1} parent=1 // pred_check
      _
    $region3: #{vae_forward.1} parent=1 // pred_check_branch
      %19 = sbr.rel (0) target = $region5
    $region4: #{vae_forward.1} parent=1 // pred_region
      _
    $region5: #{vae_forward.1} parent=1 // pred_fallthru
      _
    // Predicated region
    $region6: #{vae_forward.1} parent=1 // pred_check
      _
    $region7: #{vae_forward.1} parent=1 // pred_check_branch
      %21 = sbr.rel (0) target = $region9
    $region8: #{vae_forward.1} parent=1 // pred_region
      _
    $region9: #{vae_forward.1} parent=1 // pred_fallthru
      _
    // Predicated region
    $region10: #{vae_forward.1} parent=1 // pred_check
      _
    $region11: #{vae_forward.1} parent=1 // pred_check_branch
      %23 = sbr.rel (0) target = $region13
    $region12: #{vae_forward.1} parent=1 // pred_region
      _
    $region13: #{vae_forward.1} parent=1 // pred_fallthru
      _
    // Predicated region
    $region14: #{vae_forward.1} parent=1 // pred_check
      _
    $region15: #{vae_forward.1} parent=1 // pred_check_branch
      %25 = sbr.rel (0) target = $region17
    $region16: #{vae_forward.1} parent=1 // pred_region
      _
    $region17: #{vae_forward.1} parent=1 // pred_fallthru
      _
    // Predicated region
    $region18: #{vae_forward.1} parent=1 // pred_check
      _
    $region19: #{vae_forward.1} parent=1 // pred_check_branch
      %27 = sbr.rel (0) target = $region21
    $region20: #{vae_forward.1} parent=1 // pred_region
      _
    $region21: #{vae_forward.1} parent=1 // pred_fallthru
      _
    // Predicated region
    $region22: #{vae_forward.1} parent=1 // pred_check
      _
    $region23: #{vae_forward.1} parent=1 // pred_check_branch
      %29 = sbr.rel (0) target = $region25
    $region24: #{vae_forward.1} parent=1 // pred_region
      _
    $region25: #{vae_forward.1} parent=1 // pred_fallthru
      _
    // Predicated region
    $region26: #{vae_forward.1} parent=1 // pred_check
      _
    $region27: #{vae_forward.1} parent=1 // pred_check_branch
      %31 = sbr.rel (0) target = $region29
    $region28: #{vae_forward.1} parent=1 // pred_region
      _
    $region29: #{vae_forward.1} parent=1 // pred_fallthru
      _
    // Predicated region
    $region30: #{vae_forward.1} parent=1 // pred_check
      _
    $region31: #{vae_forward.1} parent=1 // pred_check_branch
      %33 = sbr.rel (0) target = $region33
    $region32: #{vae_forward.1} parent=1 // pred_region
      _
    $region33: #{vae_forward.1} parent=1 // pred_fallthru
      _
    // Predicated region
    $region34: #{vae_forward.1} parent=1 // pred_check
      _
    $region35: #{vae_forward.1} parent=1 // pred_check_branch
      %35 = sbr.rel (0) target = $region37
    $region36: #{vae_forward.1} parent=1 // pred_region
      _
    $region37: #{vae_forward.1} parent=1 // pred_fallthru
      _
    // Predicated region
    $region38: #{vae_forward.1} parent=1 // pred_check
      _
    $region39: #{vae_forward.1} parent=1 // pred_check_branch
      %37 = sbr.rel (0) target = $region41
    $region40: #{vae_forward.1} parent=1 // pred_region
      _
    $region41: #{vae_forward.1} parent=1 // pred_fallthru
      _
    %v38 = vld [vmem:[%s0] sm:$0xff]
    %v39 = vld [vmem:[%s0 + $0x8] sm:$0xff]
    %v40 = vld [vmem:[%s2] sm:$0xff]
    %v41 = vld [vmem:[%s2 + $0x8] sm:$0xff]
    %v42 = vld [vmem:[%s2 + $0x10] sm:$0xff]
    %v43 = vld [vmem:[%s2 + $0x18] sm:$0xff]
    %v44 = vld [vmem:[%s3] sm:$0x1]
    %v46 = vlaneseq
    %v47 = vshrl.u32 %v46, 7
    %v48 = vsub.s32 0, %v47
    %v49 = vrot.slane %v44, %v48
    %vm51 = vcmask 261120
    %v53 = vsel %vm51, %v38, 0
    %v56 = vsel %vm51, %v39, 0
    %58 = vmatprep.subr.mxu0 0.0
    %59 = vmatpush1.msra.mxu0 0.0
    %60 = vmatprep.subr.mxu0 0.0
    %61 = vmatpush1.msra.mxu0 0.0
    %62 = vmatprep.subr.mxu0 0.0
    %63 = vmatpush1.msra.mxu0 0.0
    %64 = vmatprep.subr.mxu0 0.0
    %65 = vmatpush1.msra.mxu0 0.0
    %66 = vmatprep.subr.mxu0 0.0
    %67 = vmatpush1.msra.mxu0 0.0
    %68 = vmatprep.subr.mxu0 0.0
    %69 = vmatpush1.msra.mxu0 0.0
    %70 = vmatprep.subr.mxu0 0.0
    %71 = vmatpush1.msra.mxu0 0.0
    %72 = vmatprep.subr.mxu0 0.0
    %73 = vmatpush1.msra.mxu0 0.0
    %74 = vmatprep.subr.mxu0 0.0
    %75 = vmatpush1.msra.mxu0 0.0
    %76 = vmatprep.subr.mxu0 0.0
    %77 = vmatpush1.msra.mxu0 0.0
    %78 = vmatprep.subr.mxu0 0.0
    %79 = vmatpush1.msra.mxu0 0.0
    %80 = vmatprep.subr.mxu0 0.0
    %81 = vmatpush1.msra.mxu0 0.0
    %82 = vmatprep.subr.mxu0 0.0
    %83 = vmatpush1.msra.mxu0 %v43
    %84 = vmatprep.subr.mxu0 0.0
    %85 = vmatpush1.msra.mxu0 %v42
    %86 = vmatprep.subr.mxu0 0.0
    %87 = vmatpush1.msra.mxu0 %v41
    %88 = vmatprep.subr.mxu0 0.0
    %89 = vmatpush1.msra.mxu0 %v40
    %90 = vmatprep.subr.mxu0 0.0
    %91 = vmatpush2.msra.mxu0 0.0
    %92 = vmatprep.subr.mxu0 0.0
    %93 = vmatpush2.msra.mxu0 0.0
    %94 = vmatprep.subr.mxu0 0.0
    %95 = vmatpush2.msra.mxu0 0.0
    %96 = vmatprep.subr.mxu0 0.0
    %97 = vmatpush2.msra.mxu0 0.0
    %98 = vmatprep.subr.mxu0 0.0
    %99 = vmatpush2.msra.mxu0 0.0
    %100 = vmatprep.subr.mxu0 0.0
    %101 = vmatpush2.msra.mxu0 0.0
    %102 = vmatprep.subr.mxu0 0.0
    %103 = vmatpush2.msra.mxu0 0.0
    %104 = vmatprep.subr.mxu0 0.0
    %105 = vmatpush2.msra.mxu0 0.0
    %106 = vmatprep.subr.mxu0 0.0
    %107 = vmatpush2.msra.mxu0 0.0
    %108 = vmatprep.subr.mxu0 0.0
    %109 = vmatpush2.msra.mxu0 0.0
    %110 = vmatprep.subr.mxu0 0.0
    %111 = vmatpush2.msra.mxu0 0.0
    %112 = vmatprep.subr.mxu0 0.0
    %113 = vmatpush2.msra.mxu0 0.0
    %114 = vmatprep.subr.mxu0 0.0
    %115 = vmatpush2.msra.mxu0 0.0
    %116 = vmatprep.subr.mxu0 0.0
    %117 = vmatpush2.msra.mxu0 0.0
    %118 = vmatprep.subr.mxu0 0.0
    %119 = vmatpush2.msra.mxu0 0.0
    %120 = vmatprep.subr.mxu0 0.0
    %121 = vmatpush2.msra.mxu0 0.0
    %122 = vmatprep.mubr.f32.mxu0 0.0
    %123 = vmatmul.mubr.f32.gmra.mxu0 %v53
    %v124 = vpop.f32.mrf.mxu0
    %v125 = vadd.f32 %v49, %v124
    %v126 = vpop.f32.mrf.mxu0
    %127 = vmatprep.mubr.f32.mxu0 0.0
    %128 = vmatmul.mubr.f32.gmra.mxu0 %v56
    %v129 = vpop.f32.mrf.mxu0
    %v130 = vadd.f32 %v49, %v129
    %v131 = vpop.f32.mrf.mxu0
    %132 = vdwg.mxu0
    %v133 = vmax.f32 %v125, 0.0
    %v134 = vmax.f32 %v130, 0.0
    %v135 = vld [vmem:[%s4] sm:$0xff]
    %v136 = vld [vmem:[%s4 + $0x8] sm:$0xff]
    %v137 = vld [vmem:[%s4 + $0x10] sm:$0xff]
    %v138 = vld [vmem:[%s4 + $0x18] sm:$0xff]
    %v139 = vld [vmem:[%s4 + $0x20] sm:$0xff]
    %v140 = vld [vmem:[%s4 + $0x28] sm:$0xff]
    %v141 = vld [vmem:[%s4 + $0x30] sm:$0xff]
    %v142 = vld [vmem:[%s4 + $0x38] sm:$0xff]
    %v143 = vld [vmem:[%s5] sm:$0x1]
    %v145 = vlaneseq
    %v146 = vshrl.u32 %v145, 7
    %v147 = vsub.s32 0, %v146
    %v148 = vrot.slane %v143, %v147
    %vm150 = vcmask 523264
    %v152 = vsel %vm150, %v133, 0
    %v155 = vsel %vm150, %v134, 0
    %157 = vmatprep.subr.mxu0 0.0
    %158 = vmatpush1.msra.mxu0 0.0
    %159 = vmatprep.subr.mxu0 0.0
    %160 = vmatpush1.msra.mxu0 0.0
    %161 = vmatprep.subr.mxu0 0.0
    %162 = vmatpush1.msra.mxu0 0.0
    %163 = vmatprep.subr.mxu0 0.0
    %164 = vmatpush1.msra.mxu0 0.0
    %165 = vmatprep.subr.mxu0 0.0
    %166 = vmatpush1.msra.mxu0 0.0
    %167 = vmatprep.subr.mxu0 0.0
    %168 = vmatpush1.msra.mxu0 0.0
    %169 = vmatprep.subr.mxu0 0.0
    %170 = vmatpush1.msra.mxu0 0.0
    %171 = vmatprep.subr.mxu0 0.0
    %172 = vmatpush1.msra.mxu0 0.0
    %173 = vmatprep.subr.mxu0 0.0
    %174 = vmatpush1.msra.mxu0 %v142
    %175 = vmatprep.subr.mxu0 0.0
    %176 = vmatpush1.msra.mxu0 %v141
    %177 = vmatprep.subr.mxu0 0.0
    %178 = vmatpush1.msra.mxu0 %v140
    %179 = vmatprep.subr.mxu0 0.0
    %180 = vmatpush1.msra.mxu0 %v139
    %181 = vmatprep.subr.mxu0 0.0
    %182 = vmatpush1.msra.mxu0 %v138
    %183 = vmatprep.subr.mxu0 0.0
    %184 = vmatpush1.msra.mxu0 %v137
    %185 = vmatprep.subr.mxu0 0.0
    %186 = vmatpush1.msra.mxu0 %v136
    %187 = vmatprep.subr.mxu0 0.0
    %188 = vmatpush1.msra.mxu0 %v135
    %189 = vmatprep.subr.mxu0 0.0
    %190 = vmatpush2.msra.mxu0 0.0
    %191 = vmatprep.subr.mxu0 0.0
    %192 = vmatpush2.msra.mxu0 0.0
    %193 = vmatprep.subr.mxu0 0.0
    %194 = vmatpush2.msra.mxu0 0.0
    %195 = vmatprep.subr.mxu0 0.0
    %196 = vmatpush2.msra.mxu0 0.0
    %197 = vmatprep.subr.mxu0 0.0
    %198 = vmatpush2.msra.mxu0 0.0
    %199 = vmatprep.subr.mxu0 0.0
    %200 = vmatpush2.msra.mxu0 0.0
    %201 = vmatprep.subr.mxu0 0.0
    %202 = vmatpush2.msra.mxu0 0.0
    %203 = vmatprep.subr.mxu0 0.0
    %204 = vmatpush2.msra.mxu0 0.0
    %205 = vmatprep.subr.mxu0 0.0
    %206 = vmatpush2.msra.mxu0 0.0
    %207 = vmatprep.subr.mxu0 0.0
    %208 = vmatpush2.msra.mxu0 0.0
    %209 = vmatprep.subr.mxu0 0.0
    %210 = vmatpush2.msra.mxu0 0.0
    %211 = vmatprep.subr.mxu0 0.0
    %212 = vmatpush2.msra.mxu0 0.0
    %213 = vmatprep.subr.mxu0 0.0
    %214 = vmatpush2.msra.mxu0 0.0
    %215 = vmatprep.subr.mxu0 0.0
    %216 = vmatpush2.msra.mxu0 0.0
    %217 = vmatprep.subr.mxu0 0.0
    %218 = vmatpush2.msra.mxu0 0.0
    %219 = vmatprep.subr.mxu0 0.0
    %220 = vmatpush2.msra.mxu0 0.0
    %221 = vmatprep.mubr.f32.mxu0 0.0
    %222 = vmatmul.mubr.f32.gmra.mxu0 %v152
    %v223 = vpop.f32.mrf.mxu0
    %v224 = vadd.f32 %v148, %v223
    %v225 = vpop.f32.mrf.mxu0
    %226 = vmatprep.mubr.f32.mxu0 0.0
    %227 = vmatmul.mubr.f32.gmra.mxu0 %v155
    %v228 = vpop.f32.mrf.mxu0
    %v229 = vadd.f32 %v148, %v228
    %v230 = vpop.f32.mrf.mxu0
    %231 = vdwg.mxu0
    %v232 = vmul.f32 %v224, 1.442695
    %v233 = vpow.pop %v232
    %v234 = vmul.f32 %v229, 1.442695
    %v235 = vpow.pop %v234
    %v236 = vld [vmem:[%s1] sm:$0xff]
    %v237 = vld [vmem:[%s1 + $0x8] sm:$0xff]
    %240 = vrot.lane.b32.xlu0 %v236, 16
    %v241 = vpop.permute.xlu0 %240
    %242 = vrot.lane.b32.xlu0 %v237, 16
    %v243 = vpop.permute.xlu0 %242
    %v246 = vmul.f32 %v233, %v241
    %v247 = vmul.f32 %v235, %v243
    %250 = vrot.lane.b32.xlu0 %v246, 112
    %v251 = vpop.permute.xlu0 %250
    %252 = vrot.lane.b32.xlu0 %v247, 112
    %v253 = vpop.permute.xlu0 %252
    %v256 = vadd.f32 %v224, %v251
    %v257 = vadd.f32 %v229, %v253
    %v258 = vld [vmem:[%s6] sm:$0xff]
    %v259 = vld [vmem:[%s6 + $0x8] sm:$0xff]
    %v260 = vld [vmem:[%s7] sm:$0x1]
    %v262 = vlaneseq
    %v263 = vshrl.u32 %v262, 7
    %v264 = vsub.s32 0, %v263
    %v265 = vrot.slane %v260, %v264
    %vm267 = vcmask 130048
    %v269 = vsel %vm267, %v256, 0
    %v272 = vsel %vm267, %v257, 0
    %274 = vmatprep.subr.mxu0 0.0
    %275 = vmatpush1.msra.mxu0 0.0
    %276 = vmatprep.subr.mxu0 0.0
    %277 = vmatpush1.msra.mxu0 0.0
    %278 = vmatprep.subr.mxu0 0.0
    %279 = vmatpush1.msra.mxu0 0.0
    %280 = vmatprep.subr.mxu0 0.0
    %281 = vmatpush1.msra.mxu0 0.0
    %282 = vmatprep.subr.mxu0 0.0
    %283 = vmatpush1.msra.mxu0 0.0
    %284 = vmatprep.subr.mxu0 0.0
    %285 = vmatpush1.msra.mxu0 0.0
    %286 = vmatprep.subr.mxu0 0.0
    %287 = vmatpush1.msra.mxu0 0.0
    %288 = vmatprep.subr.mxu0 0.0
    %289 = vmatpush1.msra.mxu0 0.0
    %290 = vmatprep.subr.mxu0 0.0
    %291 = vmatpush1.msra.mxu0 0.0
    %292 = vmatprep.subr.mxu0 0.0
    %293 = vmatpush1.msra.mxu0 0.0
    %294 = vmatprep.subr.mxu0 0.0
    %295 = vmatpush1.msra.mxu0 0.0
    %296 = vmatprep.subr.mxu0 0.0
    %297 = vmatpush1.msra.mxu0 0.0
    %298 = vmatprep.subr.mxu0 0.0
    %299 = vmatpush1.msra.mxu0 0.0
    %300 = vmatprep.subr.mxu0 0.0
    %301 = vmatpush1.msra.mxu0 0.0
    %302 = vmatprep.subr.mxu0 0.0
    %303 = vmatpush1.msra.mxu0 %v259
    %304 = vmatprep.subr.mxu0 0.0
    %305 = vmatpush1.msra.mxu0 %v258
    %306 = vmatprep.subr.mxu0 0.0
    %307 = vmatpush2.msra.mxu0 0.0
    %308 = vmatprep.subr.mxu0 0.0
    %309 = vmatpush2.msra.mxu0 0.0
    %310 = vmatprep.subr.mxu0 0.0
    %311 = vmatpush2.msra.mxu0 0.0
    %312 = vmatprep.subr.mxu0 0.0
    %313 = vmatpush2.msra.mxu0 0.0
    %314 = vmatprep.subr.mxu0 0.0
    %315 = vmatpush2.msra.mxu0 0.0
    %316 = vmatprep.subr.mxu0 0.0
    %317 = vmatpush2.msra.mxu0 0.0
    %318 = vmatprep.subr.mxu0 0.0
    %319 = vmatpush2.msra.mxu0 0.0
    %320 = vmatprep.subr.mxu0 0.0
    %321 = vmatpush2.msra.mxu0 0.0
    %322 = vmatprep.subr.mxu0 0.0
    %323 = vmatpush2.msra.mxu0 0.0
    %324 = vmatprep.subr.mxu0 0.0
    %325 = vmatpush2.msra.mxu0 0.0
    %326 = vmatprep.subr.mxu0 0.0
    %327 = vmatpush2.msra.mxu0 0.0
    %328 = vmatprep.subr.mxu0 0.0
    %329 = vmatpush2.msra.mxu0 0.0
    %330 = vmatprep.subr.mxu0 0.0
    %331 = vmatpush2.msra.mxu0 0.0
    %332 = vmatprep.subr.mxu0 0.0
    %333 = vmatpush2.msra.mxu0 0.0
    %334 = vmatprep.subr.mxu0 0.0
    %335 = vmatpush2.msra.mxu0 0.0
    %336 = vmatprep.subr.mxu0 0.0
    %337 = vmatpush2.msra.mxu0 0.0
    %338 = vmatprep.mubr.f32.mxu0 0.0
    %339 = vmatmul.mubr.f32.gmra.mxu0 %v269
    %v340 = vpop.f32.mrf.mxu0
    %v341 = vadd.f32 %v265, %v340
    %v342 = vpop.f32.mrf.mxu0
    %343 = vmatprep.mubr.f32.mxu0 0.0
    %344 = vmatmul.mubr.f32.gmra.mxu0 %v272
    %v345 = vpop.f32.mrf.mxu0
    %v346 = vadd.f32 %v265, %v345
    %v347 = vpop.f32.mrf.mxu0
    %348 = vdwg.mxu0
    %v349 = vmax.f32 %v341, 0.0
    %v350 = vmax.f32 %v346, 0.0
    %v351 = vld [vmem:[%s8] sm:$0xff]
    %v352 = vld [vmem:[%s8 + $0x8] sm:$0xff]
    %v353 = vld [vmem:[%s8 + $0x10] sm:$0xff]
    %v354 = vld [vmem:[%s8 + $0x18] sm:$0xff]
    %v355 = vld [vmem:[%s8 + $0x20] sm:$0xff]
    %v356 = vld [vmem:[%s8 + $0x28] sm:$0xff]
    %v357 = vld [vmem:[%s8 + $0x30] sm:$0xff]
    %v358 = vld [vmem:[%s8 + $0x38] sm:$0xff]
    %v359 = vld [vmem:[%s9] sm:$0x1]
    %v361 = vlaneseq
    %v362 = vshrl.u32 %v361, 7
    %v363 = vsub.s32 0, %v362
    %v364 = vrot.slane %v359, %v363
    %v367 = vsel %vm150, %v349, 0
    %v370 = vsel %vm150, %v350, 0
    %372 = vmatprep.subr.mxu0 0.0
    %373 = vmatpush1.msra.mxu0 0.0
    %374 = vmatprep.subr.mxu0 0.0
    %375 = vmatpush1.msra.mxu0 0.0
    %376 = vmatprep.subr.mxu0 0.0
    %377 = vmatpush1.msra.mxu0 0.0
    %378 = vmatprep.subr.mxu0 0.0
    %379 = vmatpush1.msra.mxu0 0.0
    %380 = vmatprep.subr.mxu0 0.0
    %381 = vmatpush1.msra.mxu0 0.0
    %382 = vmatprep.subr.mxu0 0.0
    %383 = vmatpush1.msra.mxu0 0.0
    %384 = vmatprep.subr.mxu0 0.0
    %385 = vmatpush1.msra.mxu0 0.0
    %386 = vmatprep.subr.mxu0 0.0
    %387 = vmatpush1.msra.mxu0 0.0
    %388 = vmatprep.subr.mxu0 0.0
    %389 = vmatpush1.msra.mxu0 %v358
    %390 = vmatprep.subr.mxu0 0.0
    %391 = vmatpush1.msra.mxu0 %v357
    %392 = vmatprep.subr.mxu0 0.0
    %393 = vmatpush1.msra.mxu0 %v356
    %394 = vmatprep.subr.mxu0 0.0
    %395 = vmatpush1.msra.mxu0 %v355
    %396 = vmatprep.subr.mxu0 0.0
    %397 = vmatpush1.msra.mxu0 %v354
    %398 = vmatprep.subr.mxu0 0.0
    %399 = vmatpush1.msra.mxu0 %v353
    %400 = vmatprep.subr.mxu0 0.0
    %401 = vmatpush1.msra.mxu0 %v352
    %402 = vmatprep.subr.mxu0 0.0
    %403 = vmatpush1.msra.mxu0 %v351
    %404 = vmatprep.subr.mxu0 0.0
    %405 = vmatpush2.msra.mxu0 0.0
    %406 = vmatprep.subr.mxu0 0.0
    %407 = vmatpush2.msra.mxu0 0.0
    %408 = vmatprep.subr.mxu0 0.0
    %409 = vmatpush2.msra.mxu0 0.0
    %410 = vmatprep.subr.mxu0 0.0
    %411 = vmatpush2.msra.mxu0 0.0
    %412 = vmatprep.subr.mxu0 0.0
    %413 = vmatpush2.msra.mxu0 0.0
    %414 = vmatprep.subr.mxu0 0.0
    %415 = vmatpush2.msra.mxu0 0.0
    %416 = vmatprep.subr.mxu0 0.0
    %417 = vmatpush2.msra.mxu0 0.0
    %418 = vmatprep.subr.mxu0 0.0
    %419 = vmatpush2.msra.mxu0 0.0
    %420 = vmatprep.subr.mxu0 0.0
    %421 = vmatpush2.msra.mxu0 0.0
    %422 = vmatprep.subr.mxu0 0.0
    %423 = vmatpush2.msra.mxu0 0.0
    %424 = vmatprep.subr.mxu0 0.0
    %425 = vmatpush2.msra.mxu0 0.0
    %426 = vmatprep.subr.mxu0 0.0
    %427 = vmatpush2.msra.mxu0 0.0
    %428 = vmatprep.subr.mxu0 0.0
    %429 = vmatpush2.msra.mxu0 0.0
    %430 = vmatprep.subr.mxu0 0.0
    %431 = vmatpush2.msra.mxu0 0.0
    %432 = vmatprep.subr.mxu0 0.0
    %433 = vmatpush2.msra.mxu0 0.0
    %434 = vmatprep.subr.mxu0 0.0
    %435 = vmatpush2.msra.mxu0 0.0
    %436 = vmatprep.mubr.f32.mxu0 0.0
    %437 = vmatmul.mubr.f32.gmra.mxu0 %v367
    %v438 = vpop.f32.mrf.mxu0
    %v439 = vadd.f32 %v364, %v438
    %v440 = vpop.f32.mrf.mxu0
    %441 = vmatprep.mubr.f32.mxu0 0.0
    %442 = vmatmul.mubr.f32.gmra.mxu0 %v370
    %v443 = vpop.f32.mrf.mxu0
    %v444 = vadd.f32 %v364, %v443
    %v445 = vpop.f32.mrf.mxu0
    %446 = vdwg.mxu0
    %v447 = vmul.f32 %v439, 0.5
    %v448 = vmul.f32 %v444, 0.5
    %v449 = vtanh.pop %v447
    %v450 = vtanh.pop %v448
    %v451 = vadd.f32 %v449, 1.0
    %v452 = vadd.f32 %v450, 1.0
    %v453 = vmul.f32 %v451, 0.5
    %v454 = vmul.f32 %v452, 0.5
    %455 = vst.msk [vmem:[#allocation2] sm:$0xff] %vm51, %v453
    %456 = vst.msk [vmem:[#allocation2 + $0x8] sm:$0xff] %vm51, %v454
    %457 = vst.msk [vmem:[%s11] sm:$0xff] %vm51, %v224
    %458 = vst.msk [vmem:[%s11 + $0x8] sm:$0xff] %vm51, %v229
    // Predicated region
    $region42: #{vae_forward.1} parent=1 // pred_check
      _
    $region43: #{vae_forward.1} parent=1 // pred_check_branch
      %460 = sbr.rel (0) target = $region45
    $region44: #{vae_forward.1} parent=1 // pred_region
      %s462 = ssub.s32 256, 256
      %463 = vsyncadd [#allocation3], %s462
      %s464 = sshll.u32 [#allocation2], 4
      %s465 = int_to_ptr.vmem [resolvable:$true] %s464
      %470 = dma.vmem_to_hbm [thread:$0]  %s465, 256, %s10, [#allocation3], 128, 128, 8
    $region45: #{vae_forward.1} parent=1 // pred_fallthru
      _
    // Predicated region
    $region46: #{vae_forward.1} parent=1 // pred_check
      _
    $region47: #{vae_forward.1} parent=1 // pred_check_branch
      %472 = sbr.rel (0) target = $region49
    $region48: #{vae_forward.1} parent=1 // pred_region
      _
    $region49: #{vae_forward.1} parent=1 // pred_fallthru
      _
    // Predicated region
    $region50: #{vae_forward.1} parent=1 // pred_check
      _
    $region51: #{vae_forward.1} parent=1 // pred_check_branch
      %474 = sbr.rel (0) target = $region53
    $region52: #{vae_forward.1} parent=1 // pred_region
      %475 = dma.done [#allocation3], 256
    $region53: #{vae_forward.1} parent=1 // pred_fallthru
      _
    // Predicated region
    $region54: #{vae_forward.1} parent=1 // pred_check
      _
    $region55: #{vae_forward.1} parent=1 // pred_check_branch
      %477 = sbr.rel (0) target = $region57
    $region56: #{vae_forward.1} parent=1 // pred_region
      _
    $region57: #{vae_forward.1} parent=1 // pred_fallthru
      _
    %478 = vsyncpa [#allocation3], 1

</llo_original>
